<compile_context>
chip_gen: v5e
topology: v5e:2x2
jax: 0.10.0
libtpu: 0.0.40
codegen_flags: <defaults>
</compile_context>

<pallas_src>
import jax
import jax.numpy as jnp
from jax.experimental import pallas as pl
from jax.experimental.pallas import tpu as pltpu


def _word2vec_kernel(hidden_ref, w2_ref, o_ref):
    # hidden [B, E] (already in W2's dtype) @ W2 tile [E, TN] -> [B, TN] f32.
    o_ref[...] = jnp.dot(hidden_ref[...], w2_ref[...],
                         preferred_element_type=jnp.float32)


def _vmem_capacity_bytes():
    """Physical VMEM of the local TPU; conservative fallback = v7x's 64 MiB."""
    try:
        return int(pltpu.get_tpu_info().vmem_capacity_bytes)
    except Exception:
        return 64 * 1024 * 1024


def _pick_tn(v, e, b, w2_bytes, hid_bytes, vmem_cap, max_tn=8192):
    """Largest multiple-of-128 vocab tile keeping the double-buffered working
    set (W2 tile + output tile + hidden) under ~50% of physical VMEM."""
    budget = min(vmem_cap // 2, 64 << 20)
    per_col = 2 * e * w2_bytes + 2 * b * 4        # dbl-buffered W2 col + out col
    fixed = 2 * b * e * hid_bytes                 # dbl-buffered hidden (tiny)
    tn = (budget - fixed) // max(per_col, 1)
    tn = max(128, min(int(tn), max_tn))
    tn = (tn // 128) * 128
    v_pad128 = ((v + 127) // 128) * 128           # never bigger than (padded) V
    return min(tn, v_pad128)


def word2vec_forward(target_ids, w1, w2, *, tn=None):
    """
    target_ids: [B] int32 — index of the 1 in each one-hot input row X[b].
    w1:         [V, E] = W.weight.T   (embedding table; gathered in the wrapper)
    w2:         [E, V] = WT.weight.T  (float32 or bfloat16, streamed in tiles)
    returns logits [B, V] float32 == (one_hot(target_ids, V) @ w1) @ w2
    """
    B = target_ids.shape[0]
    V, E = w1.shape
    assert w2.shape == (E, V)

    w2_bytes = jnp.dtype(w2.dtype).itemsize
    hid_bytes = w2_bytes                     # hidden is pre-cast to W2's dtype
    vmem_cap = _vmem_capacity_bytes()

    if tn is None:
        tn = _pick_tn(V, E, B, w2_bytes, hid_bytes, vmem_cap)
    assert tn % 128 == 0

    n_tiles = pl.cdiv(V, tn)
    v_pad = n_tiles * tn
    if v_pad != V:                           # ragged vocab: pad W2 columns
        w2 = jnp.pad(w2, ((0, 0), (0, v_pad - V)))

    # X is one-hot(target_ids): X @ W1 is a row gather.  Pre-cast once so the
    # kernel never re-converts the [B, E] block per grid step.
    hidden = jnp.take(w1, target_ids, axis=0).astype(w2.dtype)   # [B, E]

    # Explicit, generation-capped VMEM budget (double-buffered tiles).
    vmem_needed = (2 * E * tn * w2_bytes     # W2 tiles
                   + 2 * B * tn * 4          # output tiles (f32)
                   + 2 * B * E * hid_bytes)  # hidden (tiny)
    vmem_limit = int(min(max(2 * vmem_needed, 4 << 20), (vmem_cap * 9) // 10))

    cost = pl.CostEstimate(
        flops=2 * B * E * v_pad,
        transcendentals=0,
        bytes_accessed=E * v_pad * w2_bytes + B * v_pad * 4 + B * E * hid_bytes,
    )

    out = pl.pallas_call(
        _word2vec_kernel,
        out_shape=jax.ShapeDtypeStruct((B, v_pad), jnp.float32),
        grid_spec=pltpu.PrefetchScalarGridSpec(
            num_scalar_prefetch=0,
            grid=(n_tiles,),                               # tile the vocab dim
            in_specs=[
                pl.BlockSpec((B, E), lambda j: (0, 0)),    # small resident hidden
                pl.BlockSpec((E, tn), lambda j: (0, j)),   # streamed W2 tiles
            ],
            out_specs=pl.BlockSpec((B, tn), lambda j: (0, j)),
        ),
        compiler_params=pltpu.CompilerParams(
            # No cross-tile state -> vocab tiles are independent; v7x's two
            # TensorCores split them, single-TC chips are unaffected.
            dimension_semantics=("parallel",),
            vmem_limit_bytes=vmem_limit,
        ),
        cost_estimate=cost,
    )(hidden, w2)

    return out[:, :V] if v_pad != V else out


if __name__ == "__main__":
    batch_size = 8
    voc_size = 2048
    embedding_size = 128

    key = jax.random.PRNGKey(0)
    k_ids, k_w, k_wt = jax.random.split(key, 3)

    target_ids = jax.random.randint(k_ids, (batch_size,), 0, voc_size,
                                    dtype=jnp.int32)
    # One-hot X, exactly as the skip-gram batches are built for this module.
    X = jax.nn.one_hot(target_ids, voc_size, dtype=jnp.float32)     # [B, V]

    # nn.Linear weight shapes are (out, in).
    W_weight = jax.random.normal(k_w, (embedding_size, voc_size),
                                 dtype=jnp.float32) * 0.1    # W:  (E, V)
    WT_weight = jax.random.normal(k_wt, (voc_size, embedding_size),
                                  dtype=jnp.float32) * 0.1   # WT: (V, E)

    w1 = W_weight.T     # [V, E]
    w2 = WT_weight.T    # [E, V]

    # Dense reference = exact PyTorch forward math.
    ref = (X @ w1) @ w2

    # 1) f32 weights, auto (VMEM-budget-derived) vocab tile.
    out_f32 = jax.block_until_ready(word2vec_forward(target_ids, w1, w2))
    assert out_f32.shape == (batch_size, voc_size)
    assert jnp.allclose(out_f32, ref, atol=1e-5, rtol=1e-5)

    # 2) bf16 W2 (halves the dominant HBM stream on every generation),
    #    f32 accumulation; error is weight+activation quantization.
    out_bf16 = jax.block_until_ready(
        word2vec_forward(target_ids, w1, w2.astype(jnp.bfloat16)))
    assert jnp.allclose(out_bf16, ref, atol=3e-2, rtol=3e-2)

    # 3) Force a small tile to exercise the multi-tile "parallel" pipeline.
    out_tiled = jax.block_until_ready(
        word2vec_forward(target_ids, w1, w2, tn=512))
    assert jnp.allclose(out_tiled, ref, atol=1e-5, rtol=1e-5)

    # 4) Ragged vocab (not a multiple of 128) exercises the padding path.
    voc2 = 1000
    ids2 = jax.random.randint(k_ids, (batch_size,), 0, voc2, dtype=jnp.int32)
    X2 = jax.nn.one_hot(ids2, voc2, dtype=jnp.float32)
    w1b = (jax.random.normal(k_w, (embedding_size, voc2),
                             dtype=jnp.float32) * 0.1).T      # [V2, E]
    w2b = (jax.random.normal(k_wt, (voc2, embedding_size),
                             dtype=jnp.float32) * 0.1).T      # [E, V2]
    ref2 = (X2 @ w1b) @ w2b
    out2 = jax.block_until_ready(word2vec_forward(ids2, w1b, w2b))
    assert out2.shape == (batch_size, voc2)
    assert jnp.allclose(out2, ref2, atol=1e-5, rtol=1e-5)

    print("KERNEL_OK")
</pallas_src>

<mosaic_0001>
module attributes {stable_mosaic.version = 11 : i64} {
  func.func @_word2vec_kernel(%arg0: i32, %arg1: memref<8x128xf32, #tpu.memory_space<vmem>>, %arg2: memref<128x2048xf32, #tpu.memory_space<vmem>>, %arg3: memref<8x2048xf32, #tpu.memory_space<vmem>>) attributes {dimension_semantics = [#tpu.dimension_semantics<parallel>], iteration_bounds = array<i64: 1>, scalar_prefetch = 0 : i64, scratch_operands = 0 : i64, tpu.core_type = #tpu.core_type<tc>, window_params = [{pipeline_mode = #tpu.pipeline_mode<synchronous>, transform_indices = @transform_0, window_bounds = array<i64: 8, 128>}, {transform_indices = @transform_1, window_bounds = array<i64: 128, 2048>}, {transform_indices = @transform_2, window_bounds = array<i64: 8, 2048>}]} {
    %c0 = arith.constant 0 : index
    %c0_0 = arith.constant 0 : index
    %0 = vector.load %arg1[%c0, %c0_0] : memref<8x128xf32, #tpu.memory_space<vmem>>, vector<8x128xf32>
    %c0_1 = arith.constant 0 : index
    %c0_2 = arith.constant 0 : index
    %1 = vector.load %arg2[%c0_1, %c0_2] : memref<128x2048xf32, #tpu.memory_space<vmem>>, vector<128x2048xf32>
    %cst = arith.constant dense<0.000000e+00> : vector<8x2048xf32>
    %2 = tpu.matmul %0, %1, %cst {dimension_numbers = #tpu.dot_dimension_numbers<[1], [0], [0], [1], [0, 0, 1, 1], [], []>} : vector<8x128xf32>, vector<128x2048xf32>, vector<8x2048xf32> -> vector<8x2048xf32>
    %c0_3 = arith.constant 0 : index
    %c0_4 = arith.constant 0 : index
    %3 = vector.load %arg3[%c0_3, %c0_4] : memref<8x2048xf32, #tpu.memory_space<vmem>>, vector<8x2048xf32>
    tpu.vector_store %arg3[%c0_3, %c0_4], %2 {strides = array<i32>} : memref<8x2048xf32, #tpu.memory_space<vmem>>, vector<8x2048xf32>,
    return
  }
  func.func @transform_0(%arg0: i32) -> (i32, i32) {
    %c0_i32 = arith.constant 0 : i32
    %c0_i32_0 = arith.constant 0 : i32
    %c0_i32_1 = arith.constant 0 : i32
    return %c0_i32, %c0_i32_0 : i32, i32
  }
  func.func @transform_1(%arg0: i32) -> (i32, i32) {
    %c0_i32 = arith.constant 0 : i32
    %c0_i32_0 = arith.constant 0 : i32
    return %c0_i32, %arg0 : i32, i32
  }
  func.func @transform_2(%arg0: i32) -> (i32, i32) {
    %c0_i32 = arith.constant 0 : i32
    %c0_i32_0 = arith.constant 0 : i32
    return %c0_i32, %arg0 : i32, i32
  }
}

</mosaic_0001>

<llo_original>
// kernel: tpu_custom_call.1
$region0: #{tpu_custom_call.1}
  #allocation0 [shape = 'u32[]', space=smem, size = 0x4, offset = 0x4, fixed_abs, tag = 'smem constant byte address 0x4 - core index']
  #allocation1 [shape = 'u32[72,128]{1,0:T(1,128)}', space=vmem, size = 0x9000, scoped, tag = 'internal scratch']
  %s0 = inlined_call_operand.hbm [shape: f32[8,128], index: 0, kind: input, shape index: {}]
  %s1 = inlined_call_operand.hbm [shape: f32[128,2048], index: 1, kind: input, shape index: {}]
  %s2 = inlined_call_operand.hbm [shape: f32[8,2048], index: 2, kind: output, shape index: {}]
  %s3 = sld [smem:[#allocation0]]
  $region26: #{tpu_custom_call.1} parent=0
    _
  %s5 = ssub.s32 1, %s3
  %s6 = scalar_select 0, %s5, %s3
  $region1: #{tpu_custom_call.1} parent=0
    #allocation2 [shape = 'u8[4096]{0}', space=vmem, size = 0x1000, scoped, tag = 'input window, operand 0, single buffered']
    #allocation3 [shape = 's32[1]{0}', space=sflag, size = 0x4, scoped, tag = 'scoped memory for tpu_custom_call.1']
    #allocation4 [shape = 's32[1]{0}', space=sflag, size = 0x4, scoped, tag = 'scoped memory for tpu_custom_call.1']
    #allocation5 [shape = 'u8[1048576]{0}', space=vmem, size = 0x100000, scoped, tag = 'input window, operand 1, single buffered']
    #allocation6 [shape = 's32[1]{0}', space=sflag, size = 0x4, scoped, tag = 'scoped memory for tpu_custom_call.1']
    #allocation7 [shape = 'u8[65536]{0}', space=vmem, size = 0x10000, scoped, tag = 'output window, operand 0, single buffered']
    %7 = vsyncpa [#allocation3], 0
    %8 = vsyncpa [#allocation6], 0
    %9 = vsyncpa [#allocation4], 0
    // Predicated region
    $region2: #{tpu_custom_call.1} parent=1 // pred_check
      _
    $region3: #{tpu_custom_call.1} parent=1 // pred_check_branch
      %11 = sbr.rel (0) target = $region5
    $region4: #{tpu_custom_call.1} parent=1 // pred_region
      %13 = vsyncadd [#allocation3], 0
      %s15 = sshll.u32 %s0, 4
      %s16 = int_to_ptr.hbm [resolvable:$true] %s15
      %s17 = sshll.u32 [#allocation2], 4
      %s18 = int_to_ptr.vmem [resolvable:$true] %s17
      %20 = dma.hbm_to_vmem [thread:$0]  %s16, 128, %s18, [#allocation3]
    $region5: #{tpu_custom_call.1} parent=1 // pred_fallthru
      _
    // Predicated region
    $region6: #{tpu_custom_call.1} parent=1 // pred_check
      _
    $region7: #{tpu_custom_call.1} parent=1 // pred_check_branch
      %22 = sbr.rel (0) target = $region9
    $region8: #{tpu_custom_call.1} parent=1 // pred_region
      %24 = vsyncadd [#allocation6], 0
      %s25 = sshll.u32 %s1, 4
      %s26 = int_to_ptr.hbm [resolvable:$true] %s25
      %s27 = sshll.u32 [#allocation5], 4
      %s28 = int_to_ptr.vmem [resolvable:$true] %s27
      %33 = dma.hbm_to_vmem [thread:$0]  %s26, 32768, %s28, [#allocation6], 2048, 2048, 128
    $region9: #{tpu_custom_call.1} parent=1 // pred_fallthru
      _
    // Predicated region
    $region10: #{tpu_custom_call.1} parent=1 // pred_check
      _
    $region11: #{tpu_custom_call.1} parent=1 // pred_check_branch
      %35 = sbr.rel (0) target = $region13
    $region12: #{tpu_custom_call.1} parent=1 // pred_region
      %37 = dma.done [#allocation3], 128
    $region13: #{tpu_custom_call.1} parent=1 // pred_fallthru
      _
    // Predicated region
    $region14: #{tpu_custom_call.1} parent=1 // pred_check
      _
    $region15: #{tpu_custom_call.1} parent=1 // pred_check_branch
      %39 = sbr.rel (0) target = $region17
    $region16: #{tpu_custom_call.1} parent=1 // pred_region
      %41 = dma.done [#allocation6], 32768
    $region17: #{tpu_custom_call.1} parent=1 // pred_fallthru
      _
    %v42 = vld [vmem:[#allocation2] sm:$0xff]
    %v43 = vld [vmem:[#allocation5] sm:$0xff]
    %v44 = vld [vmem:[#allocation5 + $0x8] sm:$0xff]
    %v45 = vld [vmem:[#allocation5 + $0x10] sm:$0xff]
    %v46 = vld [vmem:[#allocation5 + $0x18] sm:$0xff]
    %v47 = vld [vmem:[#allocation5 + $0x20] sm:$0xff]
    %v48 = vld [vmem:[#allocation5 + $0x28] sm:$0xff]
    %v49 = vld [vmem:[#allocation5 + $0x30] sm:$0xff]
    %v50 = vld [vmem:[#allocation5 + $0x38] sm:$0xff]
    %v51 = vld [vmem:[#allocation5 + $0x40] sm:$0xff]
    %v52 = vld [vmem:[#allocation5 + $0x48] sm:$0xff]
    %v53 = vld [vmem:[#allocation5 + $0x50] sm:$0xff]
    %v54 = vld [vmem:[#allocation5 + $0x58] sm:$0xff]
    %v55 = vld [vmem:[#allocation5 + $0x60] sm:$0xff]
    %v56 = vld [vmem:[#allocation5 + $0x68] sm:$0xff]
    %v57 = vld [vmem:[#allocation5 + $0x70] sm:$0xff]
    %v58 = vld [vmem:[#allocation5 + $0x78] sm:$0xff]
    %v59 = vld [vmem:[#allocation5 + $0x80] sm:$0xff]
    %v60 = vld [vmem:[#allocation5 + $0x88] sm:$0xff]
    %v61 = vld [vmem:[#allocation5 + $0x90] sm:$0xff]
    %v62 = vld [vmem:[#allocation5 + $0x98] sm:$0xff]
    %v63 = vld [vmem:[#allocation5 + $0xa0] sm:$0xff]
    %v64 = vld [vmem:[#allocation5 + $0xa8] sm:$0xff]
    %v65 = vld [vmem:[#allocation5 + $0xb0] sm:$0xff]
    %v66 = vld [vmem:[#allocation5 + $0xb8] sm:$0xff]
    %v67 = vld [vmem:[#allocation5 + $0xc0] sm:$0xff]
    %v68 = vld [vmem:[#allocation5 + $0xc8] sm:$0xff]
    %v69 = vld [vmem:[#allocation5 + $0xd0] sm:$0xff]
    %v70 = vld [vmem:[#allocation5 + $0xd8] sm:$0xff]
    %v71 = vld [vmem:[#allocation5 + $0xe0] sm:$0xff]
    %v72 = vld [vmem:[#allocation5 + $0xe8] sm:$0xff]
    %v73 = vld [vmem:[#allocation5 + $0xf0] sm:$0xff]
    %v74 = vld [vmem:[#allocation5 + $0xf8] sm:$0xff]
    %v75 = vld [vmem:[#allocation5 + $0x100] sm:$0xff]
    %v76 = vld [vmem:[#allocation5 + $0x108] sm:$0xff]
    %v77 = vld [vmem:[#allocation5 + $0x110] sm:$0xff]
    %v78 = vld [vmem:[#allocation5 + $0x118] sm:$0xff]
    %v79 = vld [vmem:[#allocation5 + $0x120] sm:$0xff]
    %v80 = vld [vmem:[#allocation5 + $0x128] sm:$0xff]
    %v81 = vld [vmem:[#allocation5 + $0x130] sm:$0xff]
    %v82 = vld [vmem:[#allocation5 + $0x138] sm:$0xff]
    %v83 = vld [vmem:[#allocation5 + $0x140] sm:$0xff]
    %v84 = vld [vmem:[#allocation5 + $0x148] sm:$0xff]
    %v85 = vld [vmem:[#allocation5 + $0x150] sm:$0xff]
    %v86 = vld [vmem:[#allocation5 + $0x158] sm:$0xff]
    %v87 = vld [vmem:[#allocation5 + $0x160] sm:$0xff]
    %v88 = vld [vmem:[#allocation5 + $0x168] sm:$0xff]
    %v89 = vld [vmem:[#allocation5 + $0x170] sm:$0xff]
    %v90 = vld [vmem:[#allocation5 + $0x178] sm:$0xff]
    %v91 = vld [vmem:[#allocation5 + $0x180] sm:$0xff]
    %v92 = vld [vmem:[#allocation5 + $0x188] sm:$0xff]
    %v93 = vld [vmem:[#allocation5 + $0x190] sm:$0xff]
    %v94 = vld [vmem:[#allocation5 + $0x198] sm:$0xff]
    %v95 = vld [vmem:[#allocation5 + $0x1a0] sm:$0xff]
    %v96 = vld [vmem:[#allocation5 + $0x1a8] sm:$0xff]
    %v97 = vld [vmem:[#allocation5 + $0x1b0] sm:$0xff]
    %v98 = vld [vmem:[#allocation5 + $0x1b8] sm:$0xff]
    %v99 = vld [vmem:[#allocation5 + $0x1c0] sm:$0xff]
    %v100 = vld [vmem:[#allocation5 + $0x1c8] sm:$0xff]
    %v101 = vld [vmem:[#allocation5 + $0x1d0] sm:$0xff]
    %v102 = vld [vmem:[#allocation5 + $0x1d8] sm:$0xff]
    %v103 = vld [vmem:[#allocation5 + $0x1e0] sm:$0xff]
    %v104 = vld [vmem:[#allocation5 + $0x1e8] sm:$0xff]
    %v105 = vld [vmem:[#allocation5 + $0x1f0] sm:$0xff]
    %v106 = vld [vmem:[#allocation5 + $0x1f8] sm:$0xff]
    %v107 = vld [vmem:[#allocation5 + $0x200] sm:$0xff]
    %v108 = vld [vmem:[#allocation5 + $0x208] sm:$0xff]
    %v109 = vld [vmem:[#allocation5 + $0x210] sm:$0xff]
    %v110 = vld [vmem:[#allocation5 + $0x218] sm:$0xff]
    %v111 = vld [vmem:[#allocation5 + $0x220] sm:$0xff]
    %v112 = vld [vmem:[#allocation5 + $0x228] sm:$0xff]
    %v113 = vld [vmem:[#allocation5 + $0x230] sm:$0xff]
    %v114 = vld [vmem:[#allocation5 + $0x238] sm:$0xff]
    %v115 = vld [vmem:[#allocation5 + $0x240] sm:$0xff]
    %v116 = vld [vmem:[#allocation5 + $0x248] sm:$0xff]
    %v117 = vld [vmem:[#allocation5 + $0x250] sm:$0xff]
    %v118 = vld [vmem:[#allocation5 + $0x258] sm:$0xff]
    %v119 = vld [vmem:[#allocation5 + $0x260] sm:$0xff]
    %v120 = vld [vmem:[#allocation5 + $0x268] sm:$0xff]
    %v121 = vld [vmem:[#allocation5 + $0x270] sm:$0xff]
    %v122 = vld [vmem:[#allocation5 + $0x278] sm:$0xff]
    %v123 = vld [vmem:[#allocation5 + $0x280] sm:$0xff]
    %v124 = vld [vmem:[#allocation5 + $0x288] sm:$0xff]
    %v125 = vld [vmem:[#allocation5 + $0x290] sm:$0xff]
    %v126 = vld [vmem:[#allocation5 + $0x298] sm:$0xff]
    %v127 = vld [vmem:[#allocation5 + $0x2a0] sm:$0xff]
    %v128 = vld [vmem:[#allocation5 + $0x2a8] sm:$0xff]
    %v129 = vld [vmem:[#allocation5 + $0x2b0] sm:$0xff]
    %v130 = vld [vmem:[#allocation5 + $0x2b8] sm:$0xff]
    %v131 = vld [vmem:[#allocation5 + $0x2c0] sm:$0xff]
    %v132 = vld [vmem:[#allocation5 + $0x2c8] sm:$0xff]
    %v133 = vld [vmem:[#allocation5 + $0x2d0] sm:$0xff]
    %v134 = vld [vmem:[#allocation5 + $0x2d8] sm:$0xff]
    %v135 = vld [vmem:[#allocation5 + $0x2e0] sm:$0xff]
    %v136 = vld [vmem:[#allocation5 + $0x2e8] sm:$0xff]
    %v137 = vld [vmem:[#allocation5 + $0x2f0] sm:$0xff]
    %v138 = vld [vmem:[#allocation5 + $0x2f8] sm:$0xff]
    %v139 = vld [vmem:[#allocation5 + $0x300] sm:$0xff]
    %v140 = vld [vmem:[#allocation5 + $0x308] sm:$0xff]
    %v141 = vld [vmem:[#allocation5 + $0x310] sm:$0xff]
    %v142 = vld [vmem:[#allocation5 + $0x318] sm:$0xff]
    %v143 = vld [vmem:[#allocation5 + $0x320] sm:$0xff]
    %v144 = vld [vmem:[#allocation5 + $0x328] sm:$0xff]
    %v145 = vld [vmem:[#allocation5 + $0x330] sm:$0xff]
    %v146 = vld [vmem:[#allocation5 + $0x338] sm:$0xff]
    %v147 = vld [vmem:[#allocation5 + $0x340] sm:$0xff]
    %v148 = vld [vmem:[#allocation5 + $0x348] sm:$0xff]
    %v149 = vld [vmem:[#allocation5 + $0x350] sm:$0xff]
    %v150 = vld [vmem:[#allocation5 + $0x358] sm:$0xff]
    %v151 = vld [vmem:[#allocation5 + $0x360] sm:$0xff]
    %v152 = vld [vmem:[#allocation5 + $0x368] sm:$0xff]
    %v153 = vld [vmem:[#allocation5 + $0x370] sm:$0xff]
    %v154 = vld [vmem:[#allocation5 + $0x378] sm:$0xff]
    %v155 = vld [vmem:[#allocation5 + $0x380] sm:$0xff]
    %v156 = vld [vmem:[#allocation5 + $0x388] sm:$0xff]
    %v157 = vld [vmem:[#allocation5 + $0x390] sm:$0xff]
    %v158 = vld [vmem:[#allocation5 + $0x398] sm:$0xff]
    %v159 = vld [vmem:[#allocation5 + $0x3a0] sm:$0xff]
    %v160 = vld [vmem:[#allocation5 + $0x3a8] sm:$0xff]
    %v161 = vld [vmem:[#allocation5 + $0x3b0] sm:$0xff]
    %v162 = vld [vmem:[#allocation5 + $0x3b8] sm:$0xff]
    %v163 = vld [vmem:[#allocation5 + $0x3c0] sm:$0xff]
    %v164 = vld [vmem:[#allocation5 + $0x3c8] sm:$0xff]
    %v165 = vld [vmem:[#allocation5 + $0x3d0] sm:$0xff]
    %v166 = vld [vmem:[#allocation5 + $0x3d8] sm:$0xff]
    %v167 = vld [vmem:[#allocation5 + $0x3e0] sm:$0xff]
    %v168 = vld [vmem:[#allocation5 + $0x3e8] sm:$0xff]
    %v169 = vld [vmem:[#allocation5 + $0x3f0] sm:$0xff]
    %v170 = vld [vmem:[#allocation5 + $0x3f8] sm:$0xff]
    %v171 = vld [vmem:[#allocation5 + $0x400] sm:$0xff]
    %v172 = vld [vmem:[#allocation5 + $0x408] sm:$0xff]
    %v173 = vld [vmem:[#allocation5 + $0x410] sm:$0xff]
    %v174 = vld [vmem:[#allocation5 + $0x418] sm:$0xff]
    %v175 = vld [vmem:[#allocation5 + $0x420] sm:$0xff]
    %v176 = vld [vmem:[#allocation5 + $0x428] sm:$0xff]
    %v177 = vld [vmem:[#allocation5 + $0x430] sm:$0xff]
    %v178 = vld [vmem:[#allocation5 + $0x438] sm:$0xff]
    %v179 = vld [vmem:[#allocation5 + $0x440] sm:$0xff]
    %v180 = vld [vmem:[#allocation5 + $0x448] sm:$0xff]
    %v181 = vld [vmem:[#allocation5 + $0x450] sm:$0xff]
    %v182 = vld [vmem:[#allocation5 + $0x458] sm:$0xff]
    %v183 = vld [vmem:[#allocation5 + $0x460] sm:$0xff]
    %v184 = vld [vmem:[#allocation5 + $0x468] sm:$0xff]
    %v185 = vld [vmem:[#allocation5 + $0x470] sm:$0xff]
    %v186 = vld [vmem:[#allocation5 + $0x478] sm:$0xff]
    %v187 = vld [vmem:[#allocation5 + $0x480] sm:$0xff]
    %v188 = vld [vmem:[#allocation5 + $0x488] sm:$0xff]
    %v189 = vld [vmem:[#allocation5 + $0x490] sm:$0xff]
    %v190 = vld [vmem:[#allocation5 + $0x498] sm:$0xff]
    %v191 = vld [vmem:[#allocation5 + $0x4a0] sm:$0xff]
    %v192 = vld [vmem:[#allocation5 + $0x4a8] sm:$0xff]
    %v193 = vld [vmem:[#allocation5 + $0x4b0] sm:$0xff]
    %v194 = vld [vmem:[#allocation5 + $0x4b8] sm:$0xff]
    %v195 = vld [vmem:[#allocation5 + $0x4c0] sm:$0xff]
    %v196 = vld [vmem:[#allocation5 + $0x4c8] sm:$0xff]
    %v197 = vld [vmem:[#allocation5 + $0x4d0] sm:$0xff]
    %v198 = vld [vmem:[#allocation5 + $0x4d8] sm:$0xff]
    %v199 = vld [vmem:[#allocation5 + $0x4e0] sm:$0xff]
    %v200 = vld [vmem:[#allocation5 + $0x4e8] sm:$0xff]
    %v201 = vld [vmem:[#allocation5 + $0x4f0] sm:$0xff]
    %v202 = vld [vmem:[#allocation5 + $0x4f8] sm:$0xff]
    %v203 = vld [vmem:[#allocation5 + $0x500] sm:$0xff]
    %v204 = vld [vmem:[#allocation5 + $0x508] sm:$0xff]
    %v205 = vld [vmem:[#allocation5 + $0x510] sm:$0xff]
    %v206 = vld [vmem:[#allocation5 + $0x518] sm:$0xff]
    %v207 = vld [vmem:[#allocation5 + $0x520] sm:$0xff]
    %v208 = vld [vmem:[#allocation5 + $0x528] sm:$0xff]
    %v209 = vld [vmem:[#allocation5 + $0x530] sm:$0xff]
    %v210 = vld [vmem:[#allocation5 + $0x538] sm:$0xff]
    %v211 = vld [vmem:[#allocation5 + $0x540] sm:$0xff]
    %v212 = vld [vmem:[#allocation5 + $0x548] sm:$0xff]
    %v213 = vld [vmem:[#allocation5 + $0x550] sm:$0xff]
    %v214 = vld [vmem:[#allocation5 + $0x558] sm:$0xff]
    %v215 = vld [vmem:[#allocation5 + $0x560] sm:$0xff]
    %v216 = vld [vmem:[#allocation5 + $0x568] sm:$0xff]
    %v217 = vld [vmem:[#allocation5 + $0x570] sm:$0xff]
    %v218 = vld [vmem:[#allocation5 + $0x578] sm:$0xff]
    %v219 = vld [vmem:[#allocation5 + $0x580] sm:$0xff]
    %v220 = vld [vmem:[#allocation5 + $0x588] sm:$0xff]
    %v221 = vld [vmem:[#allocation5 + $0x590] sm:$0xff]
    %v222 = vld [vmem:[#allocation5 + $0x598] sm:$0xff]
    %v223 = vld [vmem:[#allocation5 + $0x5a0] sm:$0xff]
    %v224 = vld [vmem:[#allocation5 + $0x5a8] sm:$0xff]
    %v225 = vld [vmem:[#allocation5 + $0x5b0] sm:$0xff]
    %v226 = vld [vmem:[#allocation5 + $0x5b8] sm:$0xff]
    %v227 = vld [vmem:[#allocation5 + $0x5c0] sm:$0xff]
    %v228 = vld [vmem:[#allocation5 + $0x5c8] sm:$0xff]
    %v229 = vld [vmem:[#allocation5 + $0x5d0] sm:$0xff]
    %v230 = vld [vmem:[#allocation5 + $0x5d8] sm:$0xff]
    %v231 = vld [vmem:[#allocation5 + $0x5e0] sm:$0xff]
    %v232 = vld [vmem:[#allocation5 + $0x5e8] sm:$0xff]
    %v233 = vld [vmem:[#allocation5 + $0x5f0] sm:$0xff]
    %v234 = vld [vmem:[#allocation5 + $0x5f8] sm:$0xff]
    %v235 = vld [vmem:[#allocation5 + $0x600] sm:$0xff]
    %v236 = vld [vmem:[#allocation5 + $0x608] sm:$0xff]
    %v237 = vld [vmem:[#allocation5 + $0x610] sm:$0xff]
    %v238 = vld [vmem:[#allocation5 + $0x618] sm:$0xff]
    %v239 = vld [vmem:[#allocation5 + $0x620] sm:$0xff]
    %v240 = vld [vmem:[#allocation5 + $0x628] sm:$0xff]
    %v241 = vld [vmem:[#allocation5 + $0x630] sm:$0xff]
    %v242 = vld [vmem:[#allocation5 + $0x638] sm:$0xff]
    %v243 = vld [vmem:[#allocation5 + $0x640] sm:$0xff]
    %v244 = vld [vmem:[#allocation5 + $0x648] sm:$0xff]
    %v245 = vld [vmem:[#allocation5 + $0x650] sm:$0xff]
    %v246 = vld [vmem:[#allocation5 + $0x658] sm:$0xff]
    %v247 = vld [vmem:[#allocation5 + $0x660] sm:$0xff]
    %v248 = vld [vmem:[#allocation5 + $0x668] sm:$0xff]
    %v249 = vld [vmem:[#allocation5 + $0x670] sm:$0xff]
    %v250 = vld [vmem:[#allocation5 + $0x678] sm:$0xff]
    %v251 = vld [vmem:[#allocation5 + $0x680] sm:$0xff]
    %v252 = vld [vmem:[#allocation5 + $0x688] sm:$0xff]
    %v253 = vld [vmem:[#allocation5 + $0x690] sm:$0xff]
    %v254 = vld [vmem:[#allocation5 + $0x698] sm:$0xff]
    %v255 = vld [vmem:[#allocation5 + $0x6a0] sm:$0xff]
    %v256 = vld [vmem:[#allocation5 + $0x6a8] sm:$0xff]
    %v257 = vld [vmem:[#allocation5 + $0x6b0] sm:$0xff]
    %v258 = vld [vmem:[#allocation5 + $0x6b8] sm:$0xff]
    %v259 = vld [vmem:[#allocation5 + $0x6c0] sm:$0xff]
    %v260 = vld [vmem:[#allocation5 + $0x6c8] sm:$0xff]
    %v261 = vld [vmem:[#allocation5 + $0x6d0] sm:$0xff]
    %v262 = vld [vmem:[#allocation5 + $0x6d8] sm:$0xff]
    %v263 = vld [vmem:[#allocation5 + $0x6e0] sm:$0xff]
    %v264 = vld [vmem:[#allocation5 + $0x6e8] sm:$0xff]
    %v265 = vld [vmem:[#allocation5 + $0x6f0] sm:$0xff]
    %v266 = vld [vmem:[#allocation5 + $0x6f8] sm:$0xff]
    %v267 = vld [vmem:[#allocation5 + $0x700] sm:$0xff]
    %v268 = vld [vmem:[#allocation5 + $0x708] sm:$0xff]
    %v269 = vld [vmem:[#allocation5 + $0x710] sm:$0xff]
    %v270 = vld [vmem:[#allocation5 + $0x718] sm:$0xff]
    %v271 = vld [vmem:[#allocation5 + $0x720] sm:$0xff]
    %v272 = vld [vmem:[#allocation5 + $0x728] sm:$0xff]
    %v273 = vld [vmem:[#allocation5 + $0x730] sm:$0xff]
    %v274 = vld [vmem:[#allocation5 + $0x738] sm:$0xff]
    %v275 = vld [vmem:[#allocation5 + $0x740] sm:$0xff]
    %v276 = vld [vmem:[#allocation5 + $0x748] sm:$0xff]
    %v277 = vld [vmem:[#allocation5 + $0x750] sm:$0xff]
    %v278 = vld [vmem:[#allocation5 + $0x758] sm:$0xff]
    %v279 = vld [vmem:[#allocation5 + $0x760] sm:$0xff]
    %v280 = vld [vmem:[#allocation5 + $0x768] sm:$0xff]
    %v281 = vld [vmem:[#allocation5 + $0x770] sm:$0xff]
    %v282 = vld [vmem:[#allocation5 + $0x778] sm:$0xff]
    %v283 = vld [vmem:[#allocation5 + $0x780] sm:$0xff]
    %v284 = vld [vmem:[#allocation5 + $0x788] sm:$0xff]
    %v285 = vld [vmem:[#allocation5 + $0x790] sm:$0xff]
    %v286 = vld [vmem:[#allocation5 + $0x798] sm:$0xff]
    %v287 = vld [vmem:[#allocation5 + $0x7a0] sm:$0xff]
    %v288 = vld [vmem:[#allocation5 + $0x7a8] sm:$0xff]
    %v289 = vld [vmem:[#allocation5 + $0x7b0] sm:$0xff]
    %v290 = vld [vmem:[#allocation5 + $0x7b8] sm:$0xff]
    %v291 = vld [vmem:[#allocation5 + $0x7c0] sm:$0xff]
    %v292 = vld [vmem:[#allocation5 + $0x7c8] sm:$0xff]
    %v293 = vld [vmem:[#allocation5 + $0x7d0] sm:$0xff]
    %v294 = vld [vmem:[#allocation5 + $0x7d8] sm:$0xff]
    %v295 = vld [vmem:[#allocation5 + $0x7e0] sm:$0xff]
    %v296 = vld [vmem:[#allocation5 + $0x7e8] sm:$0xff]
    %v297 = vld [vmem:[#allocation5 + $0x7f0] sm:$0xff]
    %v298 = vld [vmem:[#allocation5 + $0x7f8] sm:$0xff]
    %299 = vmatpush.msra.mxu0 %v283
    %300 = vmatpush.msra.mxu0 %v267
    %301 = vmatpush.msra.mxu0 %v251
    %302 = vmatpush.msra.mxu0 %v235
    %303 = vmatpush.msra.mxu0 %v219
    %304 = vmatpush.msra.mxu0 %v203
    %305 = vmatpush.msra.mxu0 %v187
    %306 = vmatpush.msra.mxu0 %v171
    %307 = vmatpush.msra.mxu0 %v155
    %308 = vmatpush.msra.mxu0 %v139
    %309 = vmatpush.msra.mxu0 %v123
    %310 = vmatpush.msra.mxu0 %v107
    %311 = vmatpush.msra.mxu0 %v91
    %312 = vmatpush.msra.mxu0 %v75
    %313 = vmatpush.msra.mxu0 %v59
    %314 = vmatpush.msra.mxu0 %v43
    %315 = vmatmul.f32.gmra.mxu0 %v42
    %v316 = vpop.f32.mrf.mxu0
    %v317 = vadd.f32 0.0, %v316
    %318 = vdwg.mxu0
    %319 = vmatpush.msra.mxu0 %v284
    %320 = vmatpush.msra.mxu0 %v268
    %321 = vmatpush.msra.mxu0 %v252
    %322 = vmatpush.msra.mxu0 %v236
    %323 = vmatpush.msra.mxu0 %v220
    %324 = vmatpush.msra.mxu0 %v204
    %325 = vmatpush.msra.mxu0 %v188
    %326 = vmatpush.msra.mxu0 %v172
    %327 = vmatpush.msra.mxu0 %v156
    %328 = vmatpush.msra.mxu0 %v140
    %329 = vmatpush.msra.mxu0 %v124
    %330 = vmatpush.msra.mxu0 %v108
    %331 = vmatpush.msra.mxu0 %v92
    %332 = vmatpush.msra.mxu0 %v76
    %333 = vmatpush.msra.mxu0 %v60
    %334 = vmatpush.msra.mxu0 %v44
    %335 = vmatmul.f32.gmra.mxu0 %v42
    %v336 = vpop.f32.mrf.mxu0
    %v337 = vadd.f32 0.0, %v336
    %338 = vdwg.mxu0
    %339 = vmatpush.msra.mxu0 %v285
    %340 = vmatpush.msra.mxu0 %v269
    %341 = vmatpush.msra.mxu0 %v253
    %342 = vmatpush.msra.mxu0 %v237
    %343 = vmatpush.msra.mxu0 %v221
    %344 = vmatpush.msra.mxu0 %v205
    %345 = vmatpush.msra.mxu0 %v189
    %346 = vmatpush.msra.mxu0 %v173
    %347 = vmatpush.msra.mxu0 %v157
    %348 = vmatpush.msra.mxu0 %v141
    %349 = vmatpush.msra.mxu0 %v125
    %350 = vmatpush.msra.mxu0 %v109
    %351 = vmatpush.msra.mxu0 %v93
    %352 = vmatpush.msra.mxu0 %v77
    %353 = vmatpush.msra.mxu0 %v61
    %354 = vmatpush.msra.mxu0 %v45
    %355 = vmatmul.f32.gmra.mxu0 %v42
    %v356 = vpop.f32.mrf.mxu0
    %v357 = vadd.f32 0.0, %v356
    %358 = vdwg.mxu0
    %359 = vmatpush.msra.mxu0 %v286
    %360 = vmatpush.msra.mxu0 %v270
    %361 = vmatpush.msra.mxu0 %v254
    %362 = vmatpush.msra.mxu0 %v238
    %363 = vmatpush.msra.mxu0 %v222
    %364 = vmatpush.msra.mxu0 %v206
    %365 = vmatpush.msra.mxu0 %v190
    %366 = vmatpush.msra.mxu0 %v174
    %367 = vmatpush.msra.mxu0 %v158
    %368 = vmatpush.msra.mxu0 %v142
    %369 = vmatpush.msra.mxu0 %v126
    %370 = vmatpush.msra.mxu0 %v110
    %371 = vmatpush.msra.mxu0 %v94
    %372 = vmatpush.msra.mxu0 %v78
    %373 = vmatpush.msra.mxu0 %v62
    %374 = vmatpush.msra.mxu0 %v46
    %375 = vmatmul.f32.gmra.mxu0 %v42
    %v376 = vpop.f32.mrf.mxu0
    %v377 = vadd.f32 0.0, %v376
    %378 = vdwg.mxu0
    %379 = vmatpush.msra.mxu0 %v287
    %380 = vmatpush.msra.mxu0 %v271
    %381 = vmatpush.msra.mxu0 %v255
    %382 = vmatpush.msra.mxu0 %v239
    %383 = vmatpush.msra.mxu0 %v223
    %384 = vmatpush.msra.mxu0 %v207
    %385 = vmatpush.msra.mxu0 %v191
    %386 = vmatpush.msra.mxu0 %v175
    %387 = vmatpush.msra.mxu0 %v159
    %388 = vmatpush.msra.mxu0 %v143
    %389 = vmatpush.msra.mxu0 %v127
    %390 = vmatpush.msra.mxu0 %v111
    %391 = vmatpush.msra.mxu0 %v95
    %392 = vmatpush.msra.mxu0 %v79
    %393 = vmatpush.msra.mxu0 %v63
    %394 = vmatpush.msra.mxu0 %v47
    %395 = vmatmul.f32.gmra.mxu0 %v42
    %v396 = vpop.f32.mrf.mxu0
    %v397 = vadd.f32 0.0, %v396
    %398 = vdwg.mxu0
    %399 = vmatpush.msra.mxu0 %v288
    %400 = vmatpush.msra.mxu0 %v272
    %401 = vmatpush.msra.mxu0 %v256
    %402 = vmatpush.msra.mxu0 %v240
    %403 = vmatpush.msra.mxu0 %v224
    %404 = vmatpush.msra.mxu0 %v208
    %405 = vmatpush.msra.mxu0 %v192
    %406 = vmatpush.msra.mxu0 %v176
    %407 = vmatpush.msra.mxu0 %v160
    %408 = vmatpush.msra.mxu0 %v144
    %409 = vmatpush.msra.mxu0 %v128
    %410 = vmatpush.msra.mxu0 %v112
    %411 = vmatpush.msra.mxu0 %v96
    %412 = vmatpush.msra.mxu0 %v80
    %413 = vmatpush.msra.mxu0 %v64
    %414 = vmatpush.msra.mxu0 %v48
    %415 = vmatmul.f32.gmra.mxu0 %v42
    %v416 = vpop.f32.mrf.mxu0
    %v417 = vadd.f32 0.0, %v416
    %418 = vdwg.mxu0
    %419 = vmatpush.msra.mxu0 %v289
    %420 = vmatpush.msra.mxu0 %v273
    %421 = vmatpush.msra.mxu0 %v257
    %422 = vmatpush.msra.mxu0 %v241
    %423 = vmatpush.msra.mxu0 %v225
    %424 = vmatpush.msra.mxu0 %v209
    %425 = vmatpush.msra.mxu0 %v193
    %426 = vmatpush.msra.mxu0 %v177
    %427 = vmatpush.msra.mxu0 %v161
    %428 = vmatpush.msra.mxu0 %v145
    %429 = vmatpush.msra.mxu0 %v129
    %430 = vmatpush.msra.mxu0 %v113
    %431 = vmatpush.msra.mxu0 %v97
    %432 = vmatpush.msra.mxu0 %v81
    %433 = vmatpush.msra.mxu0 %v65
    %434 = vmatpush.msra.mxu0 %v49
    %435 = vmatmul.f32.gmra.mxu0 %v42
    %v436 = vpop.f32.mrf.mxu0
    %v437 = vadd.f32 0.0, %v436
    %438 = vdwg.mxu0
    %439 = vmatpush.msra.mxu0 %v290
    %440 = vmatpush.msra.mxu0 %v274
    %441 = vmatpush.msra.mxu0 %v258
    %442 = vmatpush.msra.mxu0 %v242
    %443 = vmatpush.msra.mxu0 %v226
    %444 = vmatpush.msra.mxu0 %v210
    %445 = vmatpush.msra.mxu0 %v194
    %446 = vmatpush.msra.mxu0 %v178
    %447 = vmatpush.msra.mxu0 %v162
    %448 = vmatpush.msra.mxu0 %v146
    %449 = vmatpush.msra.mxu0 %v130
    %450 = vmatpush.msra.mxu0 %v114
    %451 = vmatpush.msra.mxu0 %v98
    %452 = vmatpush.msra.mxu0 %v82
    %453 = vmatpush.msra.mxu0 %v66
    %454 = vmatpush.msra.mxu0 %v50
    %455 = vmatmul.f32.gmra.mxu0 %v42
    %v456 = vpop.f32.mrf.mxu0
    %v457 = vadd.f32 0.0, %v456
    %458 = vdwg.mxu0
    %459 = vmatpush.msra.mxu0 %v291
    %460 = vmatpush.msra.mxu0 %v275
    %461 = vmatpush.msra.mxu0 %v259
    %462 = vmatpush.msra.mxu0 %v243
    %463 = vmatpush.msra.mxu0 %v227
    %464 = vmatpush.msra.mxu0 %v211
    %465 = vmatpush.msra.mxu0 %v195
    %466 = vmatpush.msra.mxu0 %v179
    %467 = vmatpush.msra.mxu0 %v163
    %468 = vmatpush.msra.mxu0 %v147
    %469 = vmatpush.msra.mxu0 %v131
    %470 = vmatpush.msra.mxu0 %v115
    %471 = vmatpush.msra.mxu0 %v99
    %472 = vmatpush.msra.mxu0 %v83
    %473 = vmatpush.msra.mxu0 %v67
    %474 = vmatpush.msra.mxu0 %v51
    %475 = vmatmul.f32.gmra.mxu0 %v42
    %v476 = vpop.f32.mrf.mxu0
    %v477 = vadd.f32 0.0, %v476
    %478 = vdwg.mxu0
    %479 = vmatpush.msra.mxu0 %v292
    %480 = vmatpush.msra.mxu0 %v276
    %481 = vmatpush.msra.mxu0 %v260
    %482 = vmatpush.msra.mxu0 %v244
    %483 = vmatpush.msra.mxu0 %v228
    %484 = vmatpush.msra.mxu0 %v212
    %485 = vmatpush.msra.mxu0 %v196
    %486 = vmatpush.msra.mxu0 %v180
    %487 = vmatpush.msra.mxu0 %v164
    %488 = vmatpush.msra.mxu0 %v148
    %489 = vmatpush.msra.mxu0 %v132
    %490 = vmatpush.msra.mxu0 %v116
    %491 = vmatpush.msra.mxu0 %v100
    %492 = vmatpush.msra.mxu0 %v84
    %493 = vmatpush.msra.mxu0 %v68
    %494 = vmatpush.msra.mxu0 %v52
    %495 = vmatmul.f32.gmra.mxu0 %v42
    %v496 = vpop.f32.mrf.mxu0
    %v497 = vadd.f32 0.0, %v496
    %498 = vdwg.mxu0
    %499 = vmatpush.msra.mxu0 %v293
    %500 = vmatpush.msra.mxu0 %v277
    %501 = vmatpush.msra.mxu0 %v261
    %502 = vmatpush.msra.mxu0 %v245
    %503 = vmatpush.msra.mxu0 %v229
    %504 = vmatpush.msra.mxu0 %v213
    %505 = vmatpush.msra.mxu0 %v197
    %506 = vmatpush.msra.mxu0 %v181
    %507 = vmatpush.msra.mxu0 %v165
    %508 = vmatpush.msra.mxu0 %v149
    %509 = vmatpush.msra.mxu0 %v133
    %510 = vmatpush.msra.mxu0 %v117
    %511 = vmatpush.msra.mxu0 %v101
    %512 = vmatpush.msra.mxu0 %v85
    %513 = vmatpush.msra.mxu0 %v69
    %514 = vmatpush.msra.mxu0 %v53
    %515 = vmatmul.f32.gmra.mxu0 %v42
    %v516 = vpop.f32.mrf.mxu0
    %v517 = vadd.f32 0.0, %v516
    %518 = vdwg.mxu0
    %519 = vmatpush.msra.mxu0 %v294
    %520 = vmatpush.msra.mxu0 %v278
    %521 = vmatpush.msra.mxu0 %v262
    %522 = vmatpush.msra.mxu0 %v246
    %523 = vmatpush.msra.mxu0 %v230
    %524 = vmatpush.msra.mxu0 %v214
    %525 = vmatpush.msra.mxu0 %v198
    %526 = vmatpush.msra.mxu0 %v182
    %527 = vmatpush.msra.mxu0 %v166
    %528 = vmatpush.msra.mxu0 %v150
    %529 = vmatpush.msra.mxu0 %v134
    %530 = vmatpush.msra.mxu0 %v118
    %531 = vmatpush.msra.mxu0 %v102
    %532 = vmatpush.msra.mxu0 %v86
    %533 = vmatpush.msra.mxu0 %v70
    %534 = vmatpush.msra.mxu0 %v54
    %535 = vmatmul.f32.gmra.mxu0 %v42
    %v536 = vpop.f32.mrf.mxu0
    %v537 = vadd.f32 0.0, %v536
    %538 = vdwg.mxu0
    %539 = vmatpush.msra.mxu0 %v295
    %540 = vmatpush.msra.mxu0 %v279
    %541 = vmatpush.msra.mxu0 %v263
    %542 = vmatpush.msra.mxu0 %v247
    %543 = vmatpush.msra.mxu0 %v231
    %544 = vmatpush.msra.mxu0 %v215
    %545 = vmatpush.msra.mxu0 %v199
    %546 = vmatpush.msra.mxu0 %v183
    %547 = vmatpush.msra.mxu0 %v167
    %548 = vmatpush.msra.mxu0 %v151
    %549 = vmatpush.msra.mxu0 %v135
    %550 = vmatpush.msra.mxu0 %v119
    %551 = vmatpush.msra.mxu0 %v103
    %552 = vmatpush.msra.mxu0 %v87
    %553 = vmatpush.msra.mxu0 %v71
    %554 = vmatpush.msra.mxu0 %v55
    %555 = vmatmul.f32.gmra.mxu0 %v42
    %v556 = vpop.f32.mrf.mxu0
    %v557 = vadd.f32 0.0, %v556
    %558 = vdwg.mxu0
    %559 = vmatpush.msra.mxu0 %v296
    %560 = vmatpush.msra.mxu0 %v280
    %561 = vmatpush.msra.mxu0 %v264
    %562 = vmatpush.msra.mxu0 %v248
    %563 = vmatpush.msra.mxu0 %v232
    %564 = vmatpush.msra.mxu0 %v216
    %565 = vmatpush.msra.mxu0 %v200
    %566 = vmatpush.msra.mxu0 %v184
    %567 = vmatpush.msra.mxu0 %v168
    %568 = vmatpush.msra.mxu0 %v152
    %569 = vmatpush.msra.mxu0 %v136
    %570 = vmatpush.msra.mxu0 %v120
    %571 = vmatpush.msra.mxu0 %v104
    %572 = vmatpush.msra.mxu0 %v88
    %573 = vmatpush.msra.mxu0 %v72
    %574 = vmatpush.msra.mxu0 %v56
    %575 = vmatmul.f32.gmra.mxu0 %v42
    %v576 = vpop.f32.mrf.mxu0
    %v577 = vadd.f32 0.0, %v576
    %578 = vdwg.mxu0
    %579 = vmatpush.msra.mxu0 %v297
    %580 = vmatpush.msra.mxu0 %v281
    %581 = vmatpush.msra.mxu0 %v265
    %582 = vmatpush.msra.mxu0 %v249
    %583 = vmatpush.msra.mxu0 %v233
    %584 = vmatpush.msra.mxu0 %v217
    %585 = vmatpush.msra.mxu0 %v201
    %586 = vmatpush.msra.mxu0 %v185
    %587 = vmatpush.msra.mxu0 %v169
    %588 = vmatpush.msra.mxu0 %v153
    %589 = vmatpush.msra.mxu0 %v137
    %590 = vmatpush.msra.mxu0 %v121
    %591 = vmatpush.msra.mxu0 %v105
    %592 = vmatpush.msra.mxu0 %v89
    %593 = vmatpush.msra.mxu0 %v73
    %594 = vmatpush.msra.mxu0 %v57
    %595 = vmatmul.f32.gmra.mxu0 %v42
    %v596 = vpop.f32.mrf.mxu0
    %v597 = vadd.f32 0.0, %v596
    %598 = vdwg.mxu0
    %599 = vmatpush.msra.mxu0 %v298
    %600 = vmatpush.msra.mxu0 %v282
    %601 = vmatpush.msra.mxu0 %v266
    %602 = vmatpush.msra.mxu0 %v250
    %603 = vmatpush.msra.mxu0 %v234
    %604 = vmatpush.msra.mxu0 %v218
    %605 = vmatpush.msra.mxu0 %v202
    %606 = vmatpush.msra.mxu0 %v186
    %607 = vmatpush.msra.mxu0 %v170
    %608 = vmatpush.msra.mxu0 %v154
    %609 = vmatpush.msra.mxu0 %v138
    %610 = vmatpush.msra.mxu0 %v122
    %611 = vmatpush.msra.mxu0 %v106
    %612 = vmatpush.msra.mxu0 %v90
    %613 = vmatpush.msra.mxu0 %v74
    %614 = vmatpush.msra.mxu0 %v58
    %615 = vmatmul.f32.gmra.mxu0 %v42
    %v616 = vpop.f32.mrf.mxu0
    %v617 = vadd.f32 0.0, %v616
    %618 = vdwg.mxu0
    %619 = vst [vmem:[#allocation7] sm:$0xff] %v317
    %620 = vst [vmem:[#allocation7 + $0x8] sm:$0xff] %v337
    %621 = vst [vmem:[#allocation7 + $0x10] sm:$0xff] %v357
    %622 = vst [vmem:[#allocation7 + $0x18] sm:$0xff] %v377
    %623 = vst [vmem:[#allocation7 + $0x20] sm:$0xff] %v397
    %624 = vst [vmem:[#allocation7 + $0x28] sm:$0xff] %v417
    %625 = vst [vmem:[#allocation7 + $0x30] sm:$0xff] %v437
    %626 = vst [vmem:[#allocation7 + $0x38] sm:$0xff] %v457
    %627 = vst [vmem:[#allocation7 + $0x40] sm:$0xff] %v477
    %628 = vst [vmem:[#allocation7 + $0x48] sm:$0xff] %v497
    %629 = vst [vmem:[#allocation7 + $0x50] sm:$0xff] %v517
    %630 = vst [vmem:[#allocation7 + $0x58] sm:$0xff] %v537
    %631 = vst [vmem:[#allocation7 + $0x60] sm:$0xff] %v557
    %632 = vst [vmem:[#allocation7 + $0x68] sm:$0xff] %v577
    %633 = vst [vmem:[#allocation7 + $0x70] sm:$0xff] %v597
    %634 = vst [vmem:[#allocation7 + $0x78] sm:$0xff] %v617
    // Predicated region
    $region18: #{tpu_custom_call.1} parent=1 // pred_check
      _
    $region19: #{tpu_custom_call.1} parent=1 // pred_check_branch
      %636 = sbr.rel (0) target = $region21
    $region20: #{tpu_custom_call.1} parent=1 // pred_region
      %638 = vsyncadd [#allocation4], 0
      %s640 = sshll.u32 [#allocation7], 4
      %s641 = int_to_ptr.vmem [resolvable:$true] %s640
      %s642 = sshll.u32 %s2, 4
      %s643 = int_to_ptr.hbm [resolvable:$true] %s642
      %645 = dma.vmem_to_hbm [thread:$0]  %s641, 2048, %s643, [#allocation4]
    $region21: #{tpu_custom_call.1} parent=1 // pred_fallthru
      _
    // Predicated region
    $region22: #{tpu_custom_call.1} parent=1 // pred_check
      _
    $region23: #{tpu_custom_call.1} parent=1 // pred_check_branch
      %647 = sbr.rel (0) target = $region25
    $region24: #{tpu_custom_call.1} parent=1 // pred_region
      %649 = dma.done [#allocation4], 2048
    $region25: #{tpu_custom_call.1} parent=1 // pred_fallthru
      _
    %650 = vsyncpa [#allocation3], 1
    %651 = vsyncpa [#allocation6], 1
    %652 = vsyncpa [#allocation4], 1

</llo_original>
